<compile_context>
chip_gen: v7x
topology: tpu7x:2x2x1
jax: 0.10.0
libtpu: 0.0.40
codegen_flags: <defaults>
</compile_context>

<pallas_src>
import functools
import math

import jax
import jax.numpy as jnp
from jax import lax
from jax.experimental import pallas as pl
from jax.experimental.pallas import tpu as pltpu

MXU_DTYPE = jnp.bfloat16  # MXU operand dtype (accumulation is always float32)


def _pick_tile(dim, target):
    """Largest tile <= target that exactly divides dim (full dim if it already fits)."""
    if dim <= target:
        return dim
    for t in range(target, 0, -1):
        if dim % t == 0:
            return t
    return dim


# ----------------------------------------------------------------------------
# Kernel 1: fused LayerNormalization + dense projection   y = LN(x) @ W
#   (torch semantics: unbiased std, alpha * (x - mean) / (std + eps) + bias)
# ----------------------------------------------------------------------------
def _ln_proj_kernel(x_ref, alpha_ref, bias_ref, w_ref, o_ref, *, eps):
    x = x_ref[0].astype(jnp.float32)                       # (tT, D)
    d = x.shape[-1]
    mean = jnp.mean(x, axis=-1, keepdims=True)
    xc = x - mean
    var = jnp.sum(xc * xc, axis=-1, keepdims=True) / (d - 1)   # Bessel (torch.std)
    inv = 1.0 / (jnp.sqrt(var) + eps)
    y = alpha_ref[...] * xc * inv + bias_ref[...]          # (tT, D), f32
    o_ref[0] = jnp.dot(
        y.astype(MXU_DTYPE), w_ref[...], preferred_element_type=jnp.float32
    ).astype(o_ref.dtype)


def ln_proj(x, alpha, bias, w, *, eps=1e-6, t_tile=256, n_tile=256):
    """x: (B, T, D); w: (D, N) -> (B, T, N).  LN is fused into the matmul prologue.

    Note: tiles default to sizes that fit v7x's 64 MiB VMEM with double buffering;
    K (=D) stays whole because LayerNorm needs the full feature row.
    """
    B, T, D = x.shape
    D2, N = w.shape
    assert D == D2
    tT = _pick_tile(T, t_tile)
    tN = _pick_tile(N, n_tile)
    return pl.pallas_call(
        functools.partial(_ln_proj_kernel, eps=eps),
        out_shape=jax.ShapeDtypeStruct((B, T, N), x.dtype),
        grid=(B, T // tT, N // tN),
        in_specs=[
            pl.BlockSpec((1, tT, D), lambda b, t, n: (b, t, 0)),
            pl.BlockSpec((1, D), lambda b, t, n: (0, 0)),
            pl.BlockSpec((1, D), lambda b, t, n: (0, 0)),
            pl.BlockSpec((D, tN), lambda b, t, n: (0, n)),
        ],
        out_specs=pl.BlockSpec((1, tT, tN), lambda b, t, n: (b, t, n)),
        compiler_params=pltpu.CompilerParams(
            dimension_semantics=("parallel", "parallel", "parallel")
        ),
    )(x, alpha.reshape(1, D), bias.reshape(1, D), w)


# ----------------------------------------------------------------------------
# Kernel 2: tiled matmul  y = x @ W  (used for the output projection w_o)
# ----------------------------------------------------------------------------
def _matmul_kernel(x_ref, w_ref, o_ref, acc_ref):
    @pl.when(pl.program_id(2) == 0)
    def _():
        acc_ref[...] = jnp.zeros_like(acc_ref)

    acc_ref[...] += jnp.dot(
        x_ref[...].astype(MXU_DTYPE),
        w_ref[...].astype(MXU_DTYPE),
        preferred_element_type=jnp.float32,
    )

    @pl.when(pl.program_id(2) == pl.num_programs(2) - 1)
    def _():
        o_ref[...] = acc_ref[...].astype(o_ref.dtype)


def matmul(x, w, *, tm=256, tn=256, tk=512, out_dtype=None):
    M, K = x.shape
    K2, N = w.shape
    assert K == K2
    tm = _pick_tile(M, tm)
    tn = _pick_tile(N, tn)
    tk = _pick_tile(K, tk)
    out_dtype = out_dtype or x.dtype
    return pl.pallas_call(
        _matmul_kernel,
        out_shape=jax.ShapeDtypeStruct((M, N), out_dtype),
        grid=(M // tm, N // tn, K // tk),
        in_specs=[
            pl.BlockSpec((tm, tk), lambda i, j, k: (i, k)),
            pl.BlockSpec((tk, tn), lambda i, j, k: (k, j)),
        ],
        out_specs=pl.BlockSpec((tm, tn), lambda i, j, k: (i, j)),
        scratch_shapes=[pltpu.VMEM((tm, tn), jnp.float32)],
        compiler_params=pltpu.CompilerParams(
            dimension_semantics=("parallel", "parallel", "arbitrary")
        ),
    )(x, w)


# ----------------------------------------------------------------------------
# Kernel 3: rotary + scaled-dot-product attention, several heads per grid step
#   Q/K/V/output stay in (B, T, H*d_h) layout; heads are picked by the BlockSpec
#   last-dim block index -> no transposes, lane-dense output stores.
# ----------------------------------------------------------------------------
def _attention_kernel(q_ref, k_ref, v_ref, cos_ref, sin_ref, mask_ref, o_ref,
                      *, scale, heads_per_block, d_h):
    cos = cos_ref[...]            # (T, d_h)  f32
    sin = sin_ref[...]            # (T, d_h)  f32, sign pre-folded (half-split form)
    mask = mask_ref[...].astype(jnp.float32)   # (T, T)
    half = d_h // 2

    def rotate(x):  # half-split rotary (W_q/W_k columns were pre-permuted on host)
        swapped = jnp.concatenate([x[:, half:], x[:, :half]], axis=-1)
        return x * cos + swapped * sin

    outs = []
    for h in range(heads_per_block):
        lo, hi = h * d_h, (h + 1) * d_h
        q = rotate(q_ref[0, :, lo:hi].astype(jnp.float32))
        k = rotate(k_ref[0, :, lo:hi].astype(jnp.float32))
        v = v_ref[0, :, lo:hi]

        # scores = q @ k^T * scale + mask  (contract last dims -> no explicit transpose)
        s = lax.dot_general(
            q.astype(MXU_DTYPE), k.astype(MXU_DTYPE),
            (((1,), (1,)), ((), ())), preferred_element_type=jnp.float32,
        ) * scale
        s = s + mask

        # softmax along last axis (f32 elementwise, EUP reciprocal)
        m = jnp.max(s, axis=-1, keepdims=True)
        p = jnp.exp(s - m)
        p = p * pl.reciprocal(jnp.sum(p, axis=-1, keepdims=True), approx=True)

        outs.append(
            jnp.dot(p.astype(MXU_DTYPE), v.astype(MXU_DTYPE),
                    preferred_element_type=jnp.float32)
        )

    o_ref[0] = jnp.concatenate(outs, axis=-1).astype(o_ref.dtype)


def _pick_heads_per_block(n_heads, d_h, target_lanes=512):
    """Largest head group whose width is lane-dense (multiple of 128 or full d_attn)."""
    best = n_heads
    for cand in range(1, n_heads + 1):
        if n_heads % cand:
            continue
        width = cand * d_h
        if width > target_lanes:
            continue
        if cand == n_heads or width % 128 == 0:
            best = cand
    return best


def attention(Q, K, V, cos, sin, mask, *, n_heads, d_attn):
    B, T, _ = Q.shape
    d_h = d_attn // n_heads
    scale = 1.0 / math.sqrt(d_attn)        # module uses sqrt(d_attn), not sqrt(d_h)
    hb = _pick_heads_per_block(n_heads, d_h)
    blk = hb * d_h
    # TODO(synk): for long sequences (T >= ~1k) convert to flash-style online softmax
    # with a KV-block grid axis to bound VMEM (especially on v7x's 64 MiB).
    return pl.pallas_call(
        functools.partial(_attention_kernel, scale=scale,
                          heads_per_block=hb, d_h=d_h),
        out_shape=jax.ShapeDtypeStruct((B, T, d_attn), Q.dtype),
        grid=(B, n_heads // hb),
        in_specs=[
            pl.BlockSpec((1, T, blk), lambda b, h: (b, 0, h)),
            pl.BlockSpec((1, T, blk), lambda b, h: (b, 0, h)),
            pl.BlockSpec((1, T, blk), lambda b, h: (b, 0, h)),
            pl.BlockSpec((T, d_h), lambda b, h: (0, 0)),
            pl.BlockSpec((T, d_h), lambda b, h: (0, 0)),
            pl.BlockSpec((T, T), lambda b, h: (0, 0)),
        ],
        out_specs=pl.BlockSpec((1, T, blk), lambda b, h: (b, 0, h)),
        compiler_params=pltpu.CompilerParams(
            dimension_semantics=("parallel", "parallel")
        ),
    )(Q, K, V, cos, sin, mask)


# ----------------------------------------------------------------------------
# Host-side glue: rotary tables (half-split, sign-folded) + W_q/W_k column permutation
# (lucidrains RotaryEmbedding defaults: theta=10000, interleaved pairs)
# ----------------------------------------------------------------------------
def rotary_tables_halfsplit(T, d_h):
    inv_freq = 1.0 / (10000.0 ** (jnp.arange(0, d_h, 2, dtype=jnp.float32) / d_h))
    pos = jnp.arange(T, dtype=jnp.float32)
    freqs = pos[:, None] * inv_freq[None, :]               # (T, d_h/2)
    cos = jnp.concatenate([jnp.cos(freqs), jnp.cos(freqs)], axis=-1)    # (T, d_h)
    sin = jnp.concatenate([-jnp.sin(freqs), jnp.sin(freqs)], axis=-1)   # sign folded
    return cos, sin


def _permute_qk_weight(w, n_heads, d_h):
    """Reorder each head's output columns from interleaved-pair order (0,1,2,3,...)
    to half-split order (0,2,4,...,1,3,5,...).  Applied identically to W_q and W_k,
    attention scores are unchanged while the in-kernel rotary becomes a half swap."""
    perm_head = jnp.concatenate([jnp.arange(0, d_h, 2), jnp.arange(1, d_h, 2)])
    perm = (jnp.arange(n_heads)[:, None] * d_h + perm_head[None, :]).reshape(-1)
    return w[:, perm]


# ----------------------------------------------------------------------------
# Full MultiHeadAttentionBlock forward
# ----------------------------------------------------------------------------
def multi_head_attention_block(params, q, k, v, mask, *, n_heads, d_attn, eps=1e-6):
    B, T, D = q.shape
    assert d_attn % n_heads == 0
    d_h = d_attn // n_heads
    assert d_h % 2 == 0, "rotary embedding needs an even head dim"

    # weights: permute Q/K columns for the half-split rotary, cast everything to bf16 once
    w_q = _permute_qk_weight(params["w_q"], n_heads, d_h).astype(MXU_DTYPE)
    w_k = _permute_qk_weight(params["w_k"], n_heads, d_h).astype(MXU_DTYPE)
    w_v = params["w_v"].astype(MXU_DTYPE)
    w_o = params["w_o"].astype(MXU_DTYPE)
    alpha, bias = params["ln_alpha"], params["ln_bias"]

    # fused Add&Norm + projection (no intermediate normalized activations in HBM)
    # TODO(synk): when q is k is v (self-attention) a single LN + fused (D, 3*d_attn)
    # projection would cut activation reads 3x; not exercised by this test.
    Q = ln_proj(q, alpha, bias, w_q, eps=eps)              # (B, T, d_attn)
    K = ln_proj(k, alpha, bias, w_k, eps=eps)
    V = ln_proj(v, alpha, bias, w_v, eps=eps)

    cos, sin = rotary_tables_halfsplit(T, d_h)

    # rotary + attention; context stays in (B, T, H*d_h) layout (no transposes)
    ctx = attention(Q, K, V, cos, sin, mask, n_heads=n_heads, d_attn=d_attn)

    # output projection
    out = matmul(ctx.reshape(B * T, d_attn), w_o, out_dtype=q.dtype).reshape(B, T, D)
    # TODO(synk): dropout / dropout_attn omitted (identity in eval mode)
    return out


# ----------------------------------------------------------------------------
# Main
# ----------------------------------------------------------------------------
if __name__ == "__main__":
    B, T, d_model = 2, 8, 32
    n_heads = 4
    d_attn = d_model            # d_attn defaults to d_model
    d_h = d_attn // n_heads

    key = jax.random.PRNGKey(0)
    kq, kk, kv, kwq, kwk, kwv, kwo = jax.random.split(key, 7)

    q = jax.random.normal(kq, (B, T, d_model), dtype=jnp.float32)
    k = jax.random.normal(kk, (B, T, d_model), dtype=jnp.float32)
    v = jax.random.normal(kv, (B, T, d_model), dtype=jnp.float32)

    # causal additive mask (T, T): 0 where allowed, -1e9 where masked
    causal = jnp.tril(jnp.ones((T, T), dtype=bool))
    mask = jnp.where(causal, 0.0, -1e9).astype(jnp.float32)

    scale = 1.0 / math.sqrt(d_model)
    params = {
        "ln_alpha": jnp.ones((d_model,), dtype=jnp.float32),
        "ln_bias": jnp.zeros((d_model,), dtype=jnp.float32),
        # weights stored as (in, out); y = x @ W
        "w_q": scale * jax.random.normal(kwq, (d_model, d_attn), dtype=jnp.float32),
        "w_k": scale * jax.random.normal(kwk, (d_model, d_attn), dtype=jnp.float32),
        "w_v": scale * jax.random.normal(kwv, (d_model, d_attn), dtype=jnp.float32),
        "w_o": scale * jax.random.normal(kwo, (d_attn, d_model), dtype=jnp.float32),
    }

    out = multi_head_attention_block(
        params, q, k, v, mask, n_heads=n_heads, d_attn=d_attn
    )
    out = jax.block_until_ready(out)
    assert out.shape == (B, T, d_model)
    print("KERNEL_OK")
</pallas_src>

<mosaic_0001>
module attributes {stable_mosaic.version = 11 : i64} {
  func.func @_ln_proj_kernel(%arg0: i32, %arg1: i32, %arg2: i32, %arg3: memref<1x8x32xf32, #tpu.memory_space<vmem>>, %arg4: memref<1x32xf32, #tpu.memory_space<vmem>>, %arg5: memref<1x32xf32, #tpu.memory_space<vmem>>, %arg6: memref<32x32xbf16, #tpu.memory_space<vmem>>, %arg7: memref<1x8x32xf32, #tpu.memory_space<vmem>>) attributes {dimension_semantics = [#tpu.dimension_semantics<parallel>, #tpu.dimension_semantics<parallel>, #tpu.dimension_semantics<parallel>], iteration_bounds = array<i64: 2, 1, 1>, scalar_prefetch = 0 : i64, scratch_operands = 0 : i64, tpu.core_type = #tpu.core_type<tc>, window_params = [{transform_indices = @transform_0, window_bounds = array<i64: 1, 8, 32>}, {pipeline_mode = #tpu.pipeline_mode<synchronous>, transform_indices = @transform_1, window_bounds = array<i64: 1, 32>}, {pipeline_mode = #tpu.pipeline_mode<synchronous>, transform_indices = @transform_2, window_bounds = array<i64: 1, 32>}, {transform_indices = @transform_3, window_bounds = array<i64: 32, 32>}, {transform_indices = @transform_4, window_bounds = array<i64: 1, 8, 32>}]} {
    %c0 = arith.constant 0 : index
    %c0_0 = arith.constant 0 : index
    %c0_1 = arith.constant 0 : index
    %0 = vector.load %arg3[%c0, %c0_0, %c0_1] : memref<1x8x32xf32, #tpu.memory_space<vmem>>, vector<1x8x32xf32>
    %1 = vector.shape_cast %0 : vector<1x8x32xf32> to vector<8x32xf32>
    %cst = arith.constant dense<0.000000e+00> : vector<8xf32>
    %2 = vector.multi_reduction <add>, %1, %cst [1] : vector<8x32xf32> to vector<8xf32>
    %3 = vector.shape_cast %2 : vector<8xf32> to vector<8x1xf32>
    %cst_2 = arith.constant 3.200000e+01 : f32
    %4 = vector.broadcast %cst_2 : f32 to vector<8x1xf32>
    %5 = arith.divf %3, %4 : vector<8x1xf32>
    %6 = vector.broadcast %5 : vector<8x1xf32> to vector<8x32xf32>
    %7 = arith.subf %1, %6 : vector<8x32xf32>
    %8 = arith.mulf %7, %7 : vector<8x32xf32>
    %cst_3 = arith.constant dense<0.000000e+00> : vector<8xf32>
    %9 = vector.multi_reduction <add>, %8, %cst_3 [1] : vector<8x32xf32> to vector<8xf32>
    %10 = vector.shape_cast %9 : vector<8xf32> to vector<8x1xf32>
    %cst_4 = arith.constant 3.100000e+01 : f32
    %11 = vector.broadcast %cst_4 : f32 to vector<8x1xf32>
    %12 = arith.divf %10, %11 : vector<8x1xf32>
    %13 = math.sqrt %12 : vector<8x1xf32>
    %cst_5 = arith.constant 9.99999997E-7 : f32
    %14 = vector.broadcast %cst_5 : f32 to vector<8x1xf32>
    %15 = arith.addf %13, %14 : vector<8x1xf32>
    %cst_6 = arith.constant 1.000000e+00 : f32
    %16 = vector.broadcast %cst_6 : f32 to vector<8x1xf32>
    %17 = arith.divf %16, %15 : vector<8x1xf32>
    %c0_7 = arith.constant 0 : index
    %c0_8 = arith.constant 0 : index
    %18 = vector.load %arg4[%c0_7, %c0_8] : memref<1x32xf32, #tpu.memory_space<vmem>>, vector<1x32xf32>
    %19 = vector.broadcast %18 : vector<1x32xf32> to vector<8x32xf32>
    %20 = arith.mulf %19, %7 : vector<8x32xf32>
    %21 = vector.broadcast %17 : vector<8x1xf32> to vector<8x32xf32>
    %22 = arith.mulf %20, %21 : vector<8x32xf32>
    %c0_9 = arith.constant 0 : index
    %c0_10 = arith.constant 0 : index
    %23 = vector.load %arg5[%c0_9, %c0_10] : memref<1x32xf32, #tpu.memory_space<vmem>>, vector<1x32xf32>
    %24 = vector.broadcast %23 : vector<1x32xf32> to vector<8x32xf32>
    %25 = arith.addf %22, %24 : vector<8x32xf32>
    %26 = arith.truncf %25 : vector<8x32xf32> to vector<8x32xbf16>
    %c0_11 = arith.constant 0 : index
    %c0_12 = arith.constant 0 : index
    %27 = vector.load %arg6[%c0_11, %c0_12] : memref<32x32xbf16, #tpu.memory_space<vmem>>, vector<32x32xbf16>
    %cst_13 = arith.constant dense<0.000000e+00> : vector<8x32xf32>
    %28 = tpu.matmul %26, %27, %cst_13 {dimension_numbers = #tpu.dot_dimension_numbers<[1], [0], [0], [1], [0, 0, 1, 1], [], []>} : vector<8x32xbf16>, vector<32x32xbf16>, vector<8x32xf32> -> vector<8x32xf32>
    %c0_14 = arith.constant 0 : index
    %c0_15 = arith.constant 0 : index
    %c0_16 = arith.constant 0 : index
    %29 = vector.load %arg7[%c0_14, %c0_15, %c0_16] : memref<1x8x32xf32, #tpu.memory_space<vmem>>, vector<1x8x32xf32>
    %30 = vector.shape_cast %29 : vector<1x8x32xf32> to vector<8x32xf32>
    %31 = vector.shape_cast %28 : vector<8x32xf32> to vector<1x8x32xf32>
    tpu.vector_store %arg7[%c0_14, %c0_15, %c0_16], %31 {strides = array<i32>} : memref<1x8x32xf32, #tpu.memory_space<vmem>>, vector<1x8x32xf32>,
    return
  }
  func.func @transform_0(%arg0: i32, %arg1: i32, %arg2: i32) -> (i32, i32, i32) {
    %c0_i32 = arith.constant 0 : i32
    %c0_i32_0 = arith.constant 0 : i32
    return %arg0, %arg1, %c0_i32 : i32, i32, i32
  }
  func.func @transform_1(%arg0: i32, %arg1: i32, %arg2: i32) -> (i32, i32) {
    %c0_i32 = arith.constant 0 : i32
    %c0_i32_0 = arith.constant 0 : i32
    %c0_i32_1 = arith.constant 0 : i32
    return %c0_i32, %c0_i32_0 : i32, i32
  }
  func.func @transform_2(%arg0: i32, %arg1: i32, %arg2: i32) -> (i32, i32) {
    %c0_i32 = arith.constant 0 : i32
    %c0_i32_0 = arith.constant 0 : i32
    %c0_i32_1 = arith.constant 0 : i32
    return %c0_i32, %c0_i32_0 : i32, i32
  }
  func.func @transform_3(%arg0: i32, %arg1: i32, %arg2: i32) -> (i32, i32) {
    %c0_i32 = arith.constant 0 : i32
    %c0_i32_0 = arith.constant 0 : i32
    return %c0_i32, %arg2 : i32, i32
  }
  func.func @transform_4(%arg0: i32, %arg1: i32, %arg2: i32) -> (i32, i32, i32) {
    %c0_i32 = arith.constant 0 : i32
    return %arg0, %arg1, %arg2 : i32, i32, i32
  }
}

</mosaic_0001>

<llo_original>
// kernel: tpu_custom_call.1
$region0: #{tpu_custom_call.1}
  #allocation0 [shape = 'u32[]', space=smem, size = 0x4, offset = 0x4, fixed_abs, tag = 'smem constant byte address 0x4 - core index']
  #allocation1 [shape = 'u32[144,128]{1,0:T(1,128)}', space=vmem, size = 0x12000, scoped, tag = 'internal scratch']
  %s0 = inlined_call_operand.hbm [shape: f32[2,8,32], index: 0, kind: input, shape index: {}]
  %s1 = inlined_call_operand.vmem [shape: f32[1,32], index: 1, kind: input, shape index: {}]
  %s2 = inlined_call_operand.vmem [shape: f32[1,32], index: 2, kind: input, shape index: {}]
  %s3 = inlined_call_operand.hbm [shape: bf16[32,32], index: 3, kind: input, shape index: {}]
  %s4 = inlined_call_operand.hbm [shape: f32[2,8,32], index: 4, kind: output, shape index: {}]
  %s5 = sld [smem:[#allocation0]]
  $region57: #{tpu_custom_call.1} parent=0
    _
  %s7 = ssub.s32 1, %s5
  %s8 = scalar_select 0, %s7, %s5
  $region1: #{tpu_custom_call.1} parent=0
    #allocation2 [shape = 'u8[8192]{0}', space=vmem, size = 0x2000, scoped, tag = 'input window, operand 0']
    #allocation3 [shape = 's32[2]{0}', space=sflag, size = 0x8, scoped, tag = 'scoped memory for tpu_custom_call.1']
    #allocation4 [shape = 's32[2]{0}', space=sflag, size = 0x8, scoped, tag = 'scoped memory for tpu_custom_call.1']
    #allocation5 [shape = 'u8[8192]{0}', space=vmem, size = 0x2000, scoped, tag = 'input window, operand 3, single buffered']
    #allocation6 [shape = 's32[1]{0}', space=sflag, size = 0x4, scoped, tag = 'scoped memory for tpu_custom_call.1']
    #allocation7 [shape = 'u8[8192]{0}', space=vmem, size = 0x2000, scoped, tag = 'output window, operand 0']
    %9 = vsyncpa [#allocation3], 0
    %s10 = scalar_lea.sflag [#allocation3], 1
    %11 = vsyncpa %s10, 0
    %12 = vsyncpa [#allocation6], 0
    %13 = vsyncpa [#allocation4], 0
    %s14 = scalar_lea.sflag [#allocation4], 1
    %15 = vsyncpa %s14, 0
    loop: start=0, step=1, limit=4
    $region2: #{tpu_custom_call.1} parent=1 // loop_pre_header
      _
    $region3: #{tpu_custom_call.1} parent=1 // loop_header
      %s17 = sphi 0, %s21
      %p18 = scmp.ge.s32.totalorder %s17, 4
      %s24 = sphi 0, %s43
      %s25 = sphi 0, %s39
      %s26 = sphi 0, %s35
      %s27 = sphi 0, %s24
      %s28 = sphi 0, %s25
      %s29 = sphi 0, %s26
      %s30 = sphi 0, %s27
      %s31 = sphi 0, %s28
      %s32 = sphi 0, %s29
      %s48 = sphi 0, %s50
      %s51 = sphi 0, %s48
      %s52 = sphi 0, %s51
      %s68 = sphi 0, %s52
      %s72 = sphi 0, %s72
      %s74 = sphi 0, %s72
      %s75 = sphi 0, %s74
      %s89 = sphi 0, %s75
      %s93 = sphi 0, %s93
      %s95 = sphi 0, %s93
      %s96 = sphi 0, %s95
      %s110 = sphi 0, %s96
      %s116 = sphi 0, %s118
      %s119 = sphi 0, %s116
      %s120 = sphi 0, %s119
      %s136 = sphi 0, %s120
      %s146 = sphi 0, %s148
      %s149 = sphi 0, %s146
      %s150 = sphi 0, %s149
      %s166 = sphi 0, %s150
    $region4: #{tpu_custom_call.1} parent=1 // loop_header_branch
      %20 = sbr.rel (%p18) target = $region8
    $region5: #{tpu_custom_call.1} parent=1 // loop_body
      %s22 = ssub.s32 %s17, 1
      %s23 = ssub.s32 %s17, 2
      %s33 = sadd.s32 1, %s26
      %p34 = scmp.ge.s32.totalorder %s33, 1
      %s35 = scalar_select %p34, 0, %s33
      %s36 = sadd.s32 1, %s25
      %s37 = scalar_select %p34, %s36, %s25
      %p38 = scmp.ge.s32.totalorder %s37, 1
      %s39 = scalar_select %p38, 0, %s37
      %s40 = sadd.s32 1, %s24
      %s41 = scalar_select %p38, %s40, %s24
      %p42 = scmp.ge.s32.totalorder %s41, 2
      %s43 = scalar_select %p42, 0, %s41
      %s44 = ssub.s32 %s24, %s43
      %s45 = ssub.s32 %s25, %s39
      %s46 = sor.u32 %s44, %s45
      %p47 = scmp.eq.s32.totalorder %s46, 0
      %s49 = sadd.s32 %s48, 1
      %s50 = scalar_select %p47, %s48, %s49
      %p53 = pneg %p47
      %p54 = scmp.eq.s32.totalorder %s17, 1
      %p55 = por %p53, %p54
      %p56 = scmp.ne.s32.totalorder %s48, %s51
      %p57 = scmp.eq.s32.totalorder %s17, 0
      %p58 = por %p56, %p57
      %p59 = scmp.ne.s32.totalorder %s48, %s51
      %p60 = scmp.eq.s32.totalorder %s22, 1
      %p61 = por %p59, %p60
      %p62 = scmp.ne.s32.totalorder %s51, %s52
      %p63 = scmp.eq.s32.totalorder %s22, 0
      %p64 = por %p62, %p63
      %p65 = scmp.ne.s32.totalorder %s51, %s52
      %p66 = scmp.eq.s32.totalorder %s23, 1
      %p67 = por %p65, %p66
      %p69 = scmp.ne.s32.totalorder %s52, %s68
      %p70 = scmp.eq.s32.totalorder %s23, 0
      %p71 = por %p69, %p70
      %s73 = sadd.s32 %s72, 1
      %p76 = scmp.eq.s32.totalorder %s17, 1
      %p77 = scmp.ne.s32.totalorder %s72, %s74
      %p78 = scmp.eq.s32.totalorder %s17, 0
      %p79 = por %p77, %p78
      %p80 = scmp.ne.s32.totalorder %s72, %s74
      %p81 = scmp.eq.s32.totalorder %s22, 1
      %p82 = por %p80, %p81
      %p83 = scmp.ne.s32.totalorder %s74, %s75
      %p84 = scmp.eq.s32.totalorder %s22, 0
      %p85 = por %p83, %p84
      %p86 = scmp.ne.s32.totalorder %s74, %s75
      %p87 = scmp.eq.s32.totalorder %s23, 1
      %p88 = por %p86, %p87
      %p90 = scmp.ne.s32.totalorder %s75, %s89
      %p91 = scmp.eq.s32.totalorder %s23, 0
      %p92 = por %p90, %p91
      %s94 = sadd.s32 %s93, 1
      %p97 = scmp.eq.s32.totalorder %s17, 1
      %p98 = scmp.ne.s32.totalorder %s93, %s95
      %p99 = scmp.eq.s32.totalorder %s17, 0
      %p100 = por %p98, %p99
      %p101 = scmp.ne.s32.totalorder %s93, %s95
      %p102 = scmp.eq.s32.totalorder %s22, 1
      %p103 = por %p101, %p102
      %p104 = scmp.ne.s32.totalorder %s95, %s96
      %p105 = scmp.eq.s32.totalorder %s22, 0
      %p106 = por %p104, %p105
      %p107 = scmp.ne.s32.totalorder %s95, %s96
      %p108 = scmp.eq.s32.totalorder %s23, 1
      %p109 = por %p107, %p108
      %p111 = scmp.ne.s32.totalorder %s96, %s110
      %p112 = scmp.eq.s32.totalorder %s23, 0
      %p113 = por %p111, %p112
      %s114 = ssub.s32 %s26, %s35
      %p115 = scmp.eq.s32.totalorder %s114, 0
      %s117 = sadd.s32 %s116, 1
      %s118 = scalar_select %p115, %s116, %s117
      %p121 = pneg %p115
      %p122 = scmp.eq.s32.totalorder %s17, 1
      %p123 = por %p121, %p122
      %p124 = scmp.ne.s32.totalorder %s116, %s119
      %p125 = scmp.eq.s32.totalorder %s17, 0
      %p126 = por %p124, %p125
      %p127 = scmp.ne.s32.totalorder %s116, %s119
      %p128 = scmp.eq.s32.totalorder %s22, 1
      %p129 = por %p127, %p128
      %p130 = scmp.ne.s32.totalorder %s119, %s120
      %p131 = scmp.eq.s32.totalorder %s22, 0
      %p132 = por %p130, %p131
      %p133 = scmp.ne.s32.totalorder %s119, %s120
      %p134 = scmp.eq.s32.totalorder %s23, 1
      %p135 = por %p133, %p134
      %p137 = scmp.ne.s32.totalorder %s120, %s136
      %p138 = scmp.eq.s32.totalorder %s23, 0
      %p139 = por %p137, %p138
      %s140 = ssub.s32 %s24, %s43
      %s141 = ssub.s32 %s25, %s39
      %s142 = sor.u32 %s140, %s141
      %s143 = ssub.s32 %s26, %s35
      %s144 = sor.u32 %s142, %s143
      %p145 = scmp.eq.s32.totalorder %s144, 0
      %s147 = sadd.s32 %s146, 1
      %s148 = scalar_select %p145, %s146, %s147
      %p151 = pneg %p145
      %p152 = scmp.eq.s32.totalorder %s17, 1
      %p153 = por %p151, %p152
      %p154 = scmp.ne.s32.totalorder %s146, %s149
      %p155 = scmp.eq.s32.totalorder %s17, 0
      %p156 = por %p154, %p155
      %p157 = scmp.ne.s32.totalorder %s146, %s149
      %p158 = scmp.eq.s32.totalorder %s22, 1
      %p159 = por %p157, %p158
      %p160 = scmp.ne.s32.totalorder %s149, %s150
      %p161 = scmp.eq.s32.totalorder %s22, 0
      %p162 = por %p160, %p161
      %p163 = scmp.ne.s32.totalorder %s149, %s150
      %p164 = scmp.eq.s32.totalorder %s23, 1
      %p165 = por %p163, %p164
      %p167 = scmp.ne.s32.totalorder %s150, %s166
      %p168 = scmp.eq.s32.totalorder %s23, 0
      %p169 = por %p167, %p168
      %p170 = scmp.le.s32.totalorder 1, %s17
      %p171 = scmp.lt.s32.totalorder %s17, 3
      %p172 = pnand %p170, %p171
      %p173 = pneg %p172
      // Predicated region
      $region9: #{tpu_custom_call.1} parent=5 // pred_check
        _
      $region10: #{tpu_custom_call.1} parent=5 // pred_check_branch
        %175 = sbr.rel (%p172) target = $region12
      $region11: #{tpu_custom_call.1} parent=5 // pred_region
        %s176 = ssub.s32 %s17, 1
        // Predicated region
        $region13: #{tpu_custom_call.1} parent=11 // pred_check
          %p177 = pneg %p85
        $region14: #{tpu_custom_call.1} parent=11 // pred_check_branch
          %179 = sbr.rel (%p177) target = $region16
        $region15: #{tpu_custom_call.1} parent=11 // pred_region
          _
        $region16: #{tpu_custom_call.1} parent=11 // pred_fallthru
          _
        // Predicated region
        $region17: #{tpu_custom_call.1} parent=11 // pred_check
          %p180 = pneg %p106
        $region18: #{tpu_custom_call.1} parent=11 // pred_check_branch
          %182 = sbr.rel (%p180) target = $region20
        $region19: #{tpu_custom_call.1} parent=11 // pred_region
          _
        $region20: #{tpu_custom_call.1} parent=11 // pred_fallthru
          _
        // Predicated region
        $region21: #{tpu_custom_call.1} parent=11 // pred_check
          %p183 = pneg %p132
        $region22: #{tpu_custom_call.1} parent=11 // pred_check_branch
          %185 = sbr.rel (%p183) target = $region24
        $region23: #{tpu_custom_call.1} parent=11 // pred_region
          %s187 = ssub.s32 256, 256
          %188 = vsyncadd [#allocation6], %s187
          %s189 = smul.addr %s29, 64
          %s190 = scalar_lea.hbm %s3, %s189
          %s191 = sshll.u32 [#allocation5], 4
          %s192 = int_to_ptr.vmem [resolvable:$true] %s191
          %197 = dma.hbm_to_vmem [thread:$0]  %s190, 256, %s192, [#allocation6], 64, 64, 4
        $region24: #{tpu_custom_call.1} parent=11 // pred_fallthru
          _
      $region12: #{tpu_custom_call.1} parent=5 // pred_fallthru
        _
      %p198 = scmp.lt.s32.totalorder %s17, 2
      // Predicated region
      $region25: #{tpu_custom_call.1} parent=5 // pred_check
        %p199 = pneg %p198
      $region26: #{tpu_custom_call.1} parent=5 // pred_check_branch
        %201 = sbr.rel (%p199) target = $region28
      $region27: #{tpu_custom_call.1} parent=5 // pred_region
        // Predicated region
        $region29: #{tpu_custom_call.1} parent=27 // pred_check
          %p202 = pneg %p58
        $region30: #{tpu_custom_call.1} parent=27 // pred_check_branch
          %204 = sbr.rel (%p202) target = $region32
        $region31: #{tpu_custom_call.1} parent=27 // pred_region
          %s205 = sand.u32 %s48, 1
          %s206 = scalar_lea.sflag [#allocation3], %s205
          %s207 = sand.u32 %s48, 1
          %s208 = smul.addr %s207, 8
          %s209 = scalar_lea.vmem [#allocation2], %s208
          %s211 = ssub.s32 128, 128
          %212 = vsyncadd %s206, %s211
          %s213 = sadd.s32 %s25, %s24
          %s214 = smul.addr %s213, 128
          %s215 = scalar_lea.hbm %s0, %s214
          %s217 = sshll.u32 %s209, 4
          %s218 = int_to_ptr.vmem [resolvable:$true] %s217
          %220 = dma.hbm_to_vmem [thread:$0]  %s215, 128, %s218, %s206
        $region32: #{tpu_custom_call.1} parent=27 // pred_fallthru
          _
      $region28: #{tpu_custom_call.1} parent=5 // pred_fallthru
        _
      %p221 = scmp.le.s32.totalorder 1, %s17
      %p222 = scmp.lt.s32.totalorder %s17, 3
      %p223 = pnand %p221, %p222
      %p224 = pneg %p223
      // Predicated region
      $region33: #{tpu_custom_call.1} parent=5 // pred_check
        _
      $region34: #{tpu_custom_call.1} parent=5 // pred_check_branch
        %226 = sbr.rel (%p223) target = $region36
      $region35: #{tpu_custom_call.1} parent=5 // pred_region
        %s227 = ssub.s32 %s17, 1
        %s228 = sand.u32 %s51, 1
        %s229 = scalar_lea.sflag [#allocation3], %s228
        %s230 = sand.u32 %s51, 1
        %s231 = smul.addr %s230, 8
        %s232 = scalar_lea.vmem [#allocation2], %s231
        // Predicated region
        $region37: #{tpu_custom_call.1} parent=35 // pred_check
          %p233 = pneg %p64
        $region38: #{tpu_custom_call.1} parent=35 // pred_check_branch
          %235 = sbr.rel (%p233) target = $region40
        $region39: #{tpu_custom_call.1} parent=35 // pred_region
          %236 = dma.done %s229, 128
        $region40: #{tpu_custom_call.1} parent=35 // pred_fallthru
          _
        // Predicated region
        $region41: #{tpu_custom_call.1} parent=35 // pred_check
          %p237 = pneg %p132
        $region42: #{tpu_custom_call.1} parent=35 // pred_check_branch
          %239 = sbr.rel (%p237) target = $region44
        $region43: #{tpu_custom_call.1} parent=35 // pred_region
          %240 = dma.done [#allocation6], 256
        $region44: #{tpu_custom_call.1} parent=35 // pred_fallthru
          _
        %s241 = sand.u32 %s51, 1
        %s242 = scalar_lea.sflag [#allocation3], %s241
        %s243 = sand.u32 %s51, 1
        %s244 = smul.addr %s243, 8
        %s245 = scalar_lea.vmem [#allocation2], %s244
        %p246 = pneg %p64
        %p247 = pneg %p61
        %p248 = pneg %p85
        %p249 = pneg %p82
        %p250 = pneg %p106
        %p251 = pneg %p103
        %p252 = pneg %p132
        %p253 = pneg %p129
        %p254 = pneg %p162
        %p255 = pneg %p159
        %s256 = sand.u32 %s149, 1
        %s257 = scalar_lea.sflag [#allocation4], %s256
        %s258 = sand.u32 %s149, 1
        %s259 = smul.addr %s258, 8
        %s260 = scalar_lea.vmem [#allocation7], %s259
        %v262 = vld [vmem:[%s232] sm:$0xff]
        %vm263 = vcmask 261120
        %v264 = vsel %vm263, %v262, 0.0
        %265 = vadd.xlane.f32.xlu0 %v264
        %v266 = vpop.xlane.xlu0 %265
        %v267 = vrcp.pop 32.0
        %v268 = vmul.f32 %v266, %v267
        %v269 = vsub.f32 %v262, %v268
        %v270 = vmul.f32 %v269, %v269
        %v271 = vsel %vm263, %v270, 0.0
        %272 = vadd.xlane.f32.xlu0 %v271
        %v273 = vpop.xlane.xlu0 %272
        %v274 = vrcp.pop 31.0
        %v275 = vmul.f32 %v273, %v274
        %v276 = vrsqrt.pop %v275
        %v277 = vmul.f32 %v275, %v276
        %vm278 = vcmp.eq.f32.partialorder %v275, inf
        %v279 = vsel %vm278, %v275, %v277
        %vm280 = vcmp.eq.f32.partialorder %v275, 0.0
        %v281 = vand.u32 %v275, 2147483648
        %v282 = vsel %vm280, %v281, %v279
        %v283 = vadd.f32 %v282, 1e-06
        %v284 = vrcp.pop %v283
        %v285 = vmul.f32 1.0, %v284
        %v286 = vld [vmem:[%s1] sm:$0x1]
        %v288 = vlaneseq
        %v289 = vshrl.u32 %v288, 7
        %v290 = vsub.s32 0, %v289
        %v291 = vrot.slane %v286, %v290
        %v293 = vmul.f32 %v291, %v269
        %v294 = vmul.f32 %v293, %v285
        %v295 = vld [vmem:[%s2] sm:$0x1]
        %v297 = vlaneseq
        %v298 = vshrl.u32 %v297, 7
        %v299 = vsub.s32 0, %v298
        %v300 = vrot.slane %v295, %v299
        %v302 = vadd.f32 %v294, %v300
        %v303 = vpack.c.bf16 %v302, %v302
        %v304 = vld [vmem:[#allocation5] sm:$0xf]
        %v305 = vld [vmem:[#allocation5 + $0x4] sm:$0xf]
        %v306 = vld [vmem:[#allocation5 + $0x8] sm:$0xf]
        %v307 = vld [vmem:[#allocation5 + $0xc] sm:$0xf]
        %v312 = vunpack.c.l.b16 %v304
        %v313 = vunpack.c.l.b16 %v305
        %v314 = vunpack.c.l.b16 %v306
        %v315 = vunpack.c.l.b16 %v307
        %v316 = vpack.c.b16 %v313, %v312
        %v317 = vpack.c.b16 %v315, %v314
        %v321 = vsel %vm263, %v303, 0
        %323 = vmatprep.subr.bf16.mxu0 0
        %324 = vmatpush1.bf16.msra.mxu0 %v316
        %325 = vmatprep.subr.bf16.mxu0 0
        %326 = vmatpush1.bf16.msra.mxu0 %v317
        %327 = vmatprep.subr.bf16.mxu0 0
        %328 = vmatpush1.bf16.msra.mxu0 0
        %329 = vmatprep.subr.bf16.mxu0 0
        %330 = vmatpush1.bf16.msra.mxu0 0
        %331 = vmatprep.subr.bf16.mxu0 0
        %332 = vmatpush1.bf16.msra.mxu0 0
        %333 = vmatprep.subr.bf16.mxu0 0
        %334 = vmatpush1.bf16.msra.mxu0 0
        %335 = vmatprep.subr.bf16.mxu0 0
        %336 = vmatpush1.bf16.msra.mxu0 0
        %337 = vmatprep.subr.bf16.mxu0 0
        %338 = vmatpush1.bf16.msra.mxu0 0
        %339 = vmatprep.subr.bf16.mxu0 0
        %340 = vmatpush1.bf16.msra.mxu0 0
        %341 = vmatprep.subr.bf16.mxu0 0
        %342 = vmatpush1.bf16.msra.mxu0 0
        %343 = vmatprep.subr.bf16.mxu0 0
        %344 = vmatpush1.bf16.msra.mxu0 0
        %345 = vmatprep.subr.bf16.mxu0 0
        %346 = vmatpush1.bf16.msra.mxu0 0
        %347 = vmatprep.subr.bf16.mxu0 0
        %348 = vmatpush1.bf16.msra.mxu0 0
        %349 = vmatprep.subr.bf16.mxu0 0
        %350 = vmatpush1.bf16.msra.mxu0 0
        %351 = vmatprep.subr.bf16.mxu0 0
        %352 = vmatpush1.bf16.msra.mxu0 0
        %353 = vmatprep.subr.bf16.mxu0 0
        %354 = vmatpush1.bf16.msra.mxu0 0
        %355 = vmatprep.mubr.bf16.mxu0 0
        %356 = vmatmul.mubr.bf16.gmra.mrb[0].mxu0 %v321
        %v357 = vpop.f32.mrb[0].mxu0
        %v358 = vadd.f32 0.0, %v357
        %v359 = vpop.f32.mrb[0].mxu0
        %v360 = vpop.f32.mrb[0].mxu0
        %v361 = vpop.f32.mrb[0].mxu0
        %362 = vdwg.mxu0
        %363 = vst.msk [vmem:[%s260] sm:$0xff] %vm263, %v358
        %s364 = sand.u32 %s149, 1
        %s365 = scalar_lea.sflag [#allocation4], %s364
        %s366 = sand.u32 %s149, 1
        %s367 = smul.addr %s366, 8
        %s368 = scalar_lea.vmem [#allocation7], %s367
        // Predicated region
        $region45: #{tpu_custom_call.1} parent=35 // pred_check
          %p369 = pneg %p159
        $region46: #{tpu_custom_call.1} parent=35 // pred_check_branch
          %371 = sbr.rel (%p369) target = $region48
        $region47: #{tpu_custom_call.1} parent=35 // pred_region
          %s373 = ssub.s32 128, 128
          %374 = vsyncadd %s365, %s373
          %s375 = sadd.s32 %s29, %s28
          %s376 = sadd.s32 %s375, %s27
          %s377 = smul.addr %s376, 128
          %s378 = scalar_lea.hbm %s4, %s377
          %s380 = sshll.u32 %s368, 4
          %s381 = int_to_ptr.vmem [resolvable:$true] %s380
          %383 = dma.vmem_to_hbm [thread:$0]  %s381, 128, %s378, %s365
        $region48: #{tpu_custom_call.1} parent=35 // pred_fallthru
          _
      $region36: #{tpu_custom_call.1} parent=5 // pred_fallthru
        _
      %p384 = scmp.le.s32.totalorder 2, %s17
      // Predicated region
      $region49: #{tpu_custom_call.1} parent=5 // pred_check
        %p385 = pneg %p384
      $region50: #{tpu_custom_call.1} parent=5 // pred_check_branch
        %387 = sbr.rel (%p385) target = $region52
      $region51: #{tpu_custom_call.1} parent=5 // pred_region
        %s388 = ssub.s32 %s17, 2
        // Predicated region
        $region53: #{tpu_custom_call.1} parent=51 // pred_check
          %p389 = pneg %p165
        $region54: #{tpu_custom_call.1} parent=51 // pred_check_branch
          %391 = sbr.rel (%p389) target = $region56
        $region55: #{tpu_custom_call.1} parent=51 // pred_region
          %s392 = sand.u32 %s150, 1
          %s393 = scalar_lea.sflag [#allocation4], %s392
          %s394 = sand.u32 %s150, 1
          %s395 = smul.addr %s394, 8
          %s396 = scalar_lea.vmem [#allocation7], %s395
          %397 = dma.done %s393, 128
        $region56: #{tpu_custom_call.1} parent=51 // pred_fallthru
          _
      $region52: #{tpu_custom_call.1} parent=5 // pred_fallthru
        _
    $region6: #{tpu_custom_call.1} parent=1 // loop_footer
      %s21 = sadd.s32 1, %s17
    $region7: #{tpu_custom_call.1} parent=1 // loop_footer_branch
      %16 = sbr.rel target = $region3
    $region8: #{tpu_custom_call.1} parent=1 // loop_exit
      _
    %398 = vsyncpa [#allocation3], 1
    %s399 = scalar_lea.sflag [#allocation3], 1
    %400 = vsyncpa %s399, 1
    %401 = vsyncpa [#allocation6], 1
    %402 = vsyncpa [#allocation4], 1
    %s403 = scalar_lea.sflag [#allocation4], 1
    %404 = vsyncpa %s403, 1

</llo_original>
